<compile_context>
chip_gen: v6e
topology: v6e:2x2x1
jax: 0.10.0
libtpu: 0.0.40
codegen_flags: <defaults>
</compile_context>

<pallas_src>
import functools

import jax
import jax.numpy as jnp
from jax.experimental import pallas as pl
from jax.experimental.pallas import tpu as pltpu

_EPS = 1e-8  # F.cosine_similarity default eps


def _log_sigmoid(x):
    # single-branch numerically stable logsigmoid: -softplus(-x)
    return -(jnp.maximum(-x, 0.0) + jnp.log1p(jnp.exp(-jnp.abs(x))))


def bpr_loss_kernel(text_ref, chat_ref, idx_ref, part_ref, *,
                    neg_count, batch, block_rows):
    i = pl.program_id(0)

    # --- this tile's text rows, normalized in f32 ---
    t = text_ref[...].astype(jnp.float32)                          # [TB, D]
    t_sq = jnp.sum(t * t, axis=-1, keepdims=True)
    # NOTE: per-vector norm floored at eps (product floored at eps^2); the torch
    # reference floors the norm *product* at eps — differs only for ~zero vectors.
    t_hat = t * jax.lax.rsqrt(jnp.maximum(t_sq, _EPS * _EPS))

    c_hat = chat_ref[...]                                          # [B_pad, D] bf16
    b_pad = c_hat.shape[0]

    # positive cosine score: elementwise dot with matching pre-normalized ctr rows
    row0 = pl.multiple_of(i * block_rows, block_rows)
    c_pos = chat_ref[pl.ds(row0, block_rows), :].astype(jnp.float32)
    pos = jnp.sum(t_hat * c_pos, axis=-1, keepdims=True)           # [TB, 1]

    # all pairwise cosine scores for this tile on the MXU: single-pass bf16
    # matmul with f32 accumulation (no Precision.HIGHEST multi-pass emulation).
    scores = jax.lax.dot_general(
        t_hat.astype(jnp.bfloat16), c_hat,
        dimension_numbers=(((1,), (1,)), ((), ())),                # t_hat @ c_hat.T
        preferred_element_type=jnp.float32)                        # [TB, B_pad] f32

    col = jax.lax.broadcasted_iota(jnp.int32, (block_rows, b_pad), 1)
    idx = idx_ref[...]                                             # [TB, NEG] int32

    # sum_j logsigmoid(pos - neg_j); the softmax(ones)=1/NEG weight, minus sign and
    # 1/B mean are folded into one scale in the wrapper.
    # TODO(synk): for NEG >~ 8 this per-j select/reduce goes VPU/XLU-bound; switch to
    # a scalar-prefetch gather of the NEG needed c_hat rows and a [TB,NEG] dot.
    row_loss = jnp.zeros((block_rows, 1), jnp.float32)
    for j in range(neg_count):                                     # NEG is small/static
        sel = col == idx[:, j:j + 1]       # one-hot lane select; idx assumed in [0, B)
        neg_j = jnp.sum(jnp.where(sel, scores, 0.0), axis=-1, keepdims=True)
        row_loss += _log_sigmoid(pos - neg_j)

    # mask padded tile rows (beyond the true batch)
    rows = row0 + jax.lax.broadcasted_iota(jnp.int32, (block_rows, 1), 0)
    row_loss = jnp.where(rows < batch, row_loss, 0.0)

    # per-tile partial sum -> this tile's own output block (no carried accumulator,
    # so the grid axis is 'parallel' and can shard across v7x's two TensorCores).
    part_ref[...] = jnp.sum(row_loss).reshape(1, 1, 1)


def _vmem_limit_bytes():
    """~85% of physical VMEM, capped at 112 MiB (v5e/v6e: 128 MiB phys, v7x: 64 MiB).
    Conservative 48 MiB if the hardware query is unavailable."""
    try:
        cap = int(pltpu.get_tpu_info().vmem_capacity_bytes)
        return min(int(cap * 0.85), 112 * 1024 * 1024)
    except Exception:
        return 48 * 1024 * 1024


def _build_call(kernel, num_tiles, TB, B_pad, D, NEG, vmem_limit, single_buffer_ctr):
    ctr_kwargs = {}
    if single_buffer_ctr:
        # invariant resident table: one pipeline buffer instead of the default two
        ctr_kwargs["pipeline_mode"] = pl.Buffered(1)
    return pl.pallas_call(
        kernel,
        out_shape=jax.ShapeDtypeStruct((num_tiles, 1, 1), jnp.float32),
        grid=(num_tiles,),
        in_specs=[
            pl.BlockSpec((TB, D), lambda i: (i, 0)),                    # text tile
            pl.BlockSpec((B_pad, D), lambda i: (0, 0), **ctr_kwargs),   # resident bf16 c_hat
            pl.BlockSpec((TB, NEG), lambda i: (i, 0)),                  # neg indices tile
        ],
        out_specs=pl.BlockSpec((1, 1, 1), lambda i: (i, 0, 0)),         # per-tile partials
        compiler_params=pltpu.CompilerParams(
            dimension_semantics=("parallel",),                          # megacore-shardable
            vmem_limit_bytes=vmem_limit,
        ),
    )


def bpr_loss_pallas(text_emb, ctr_emb, neg_idx, *, block_rows=None):
    B, D = text_emb.shape
    NEG = neg_idx.shape[1]

    if block_rows is None:
        block_rows = min(512, ((B + 15) // 16) * 16)
    TB = block_rows
    assert TB % 16 == 0, "block_rows must be a multiple of 16 (bf16 sublane packing)"

    num_tiles = (B + TB - 1) // TB
    B_pad = num_tiles * TB
    pad = B_pad - B

    # Pre-normalize ctr once in the wrapper (f32 math), cast to bf16: the resident
    # table costs B_pad*D*2 bytes and there is no serialized in-kernel normalize.
    c = ctr_emb.astype(jnp.float32)
    c_sq = jnp.sum(c * c, axis=-1, keepdims=True)
    c_hat = (c * jax.lax.rsqrt(jnp.maximum(c_sq, _EPS * _EPS))).astype(jnp.bfloat16)

    if pad:
        text_emb = jnp.pad(text_emb, ((0, pad), (0, 0)))
        c_hat = jnp.pad(c_hat, ((0, pad), (0, 0)))
        neg_idx = jnp.pad(neg_idx, ((0, pad), (0, 0)))
    neg_idx = neg_idx.astype(jnp.int32)
    # TODO(synk): if B_pad*D*2 outgrows v7x's 64 MiB VMEM, add a second grid axis
    # tiling c_hat rows (column tiles of the score matrix) and accumulate per tile.

    kernel = functools.partial(
        bpr_loss_kernel, neg_count=NEG, batch=B, block_rows=TB)
    vmem_limit = _vmem_limit_bytes()

    args = (text_emb, c_hat, neg_idx)
    try:
        partials = _build_call(kernel, num_tiles, TB, B_pad, D, NEG,
                               vmem_limit, single_buffer_ctr=True)(*args)
    except Exception:
        # pipeline_mode=pl.Buffered(1) unsupported on this jax version: fall back to
        # the default double-buffered (still bf16) resident table.
        partials = _build_call(kernel, num_tiles, TB, B_pad, D, NEG,
                               vmem_limit, single_buffer_ctr=False)(*args)

    # fold the softmax(ones)=1/NEG weight, the minus sign and the 1/B mean here.
    return -jnp.sum(partials) / float(NEG * B)


def sample_neg_indices(batch, neg_count, key):
    """Mirror BPRLoss.sample: indices != own index (glue, stays in plain JAX)."""
    neg_idx = jax.random.randint(key, (batch, neg_count), 0, batch - 1)
    pos_idx = jnp.arange(batch)[:, None]
    neg_idx = jnp.where(neg_idx >= pos_idx, neg_idx + 1, neg_idx)
    return neg_idx.astype(jnp.int32)


def bpr_loss_reference(text_emb, ctr_emb, neg_idx):
    """Pure-JAX reference (mirrors the PyTorch module, dns=False)."""
    eps = 1e-8
    t = text_emb.astype(jnp.float32)
    c = ctr_emb.astype(jnp.float32)
    n = c[neg_idx]                                       # [B, NEG, D]
    tn = jnp.linalg.norm(t, axis=-1, keepdims=True)
    cn = jnp.linalg.norm(c, axis=-1, keepdims=True)
    nn = jnp.linalg.norm(n, axis=-1)
    pos = jnp.sum(t * c, -1, keepdims=True) / jnp.maximum(tn * cn, eps)
    neg = jnp.sum(t[:, None, :] * n, -1) / jnp.maximum(tn * nn, eps)
    loss = jax.nn.log_sigmoid(pos - neg)
    w = jax.nn.softmax(jnp.ones_like(neg), -1)
    return jnp.mean(-jnp.sum(loss * w, -1))


if __name__ == "__main__":
    B, D, NEG = 20, 128, 3          # small shapes; B=20 with TB=16 exercises a
    TB = 16                         # 2-step grid + ragged-tile masking

    key = jax.random.PRNGKey(0)
    k_text, k_ctr, k_samp = jax.random.split(key, 3)

    text_emb = jax.random.normal(k_text, (B, D), dtype=jnp.float32)
    ctr_emb = jax.random.normal(k_ctr, (B, D), dtype=jnp.float32)
    neg_idx = sample_neg_indices(B, NEG, k_samp)

    loss = bpr_loss_pallas(text_emb, ctr_emb, neg_idx, block_rows=TB)
    loss = jax.block_until_ready(loss)

    ref = bpr_loss_reference(text_emb, ctr_emb, neg_idx)
    # bf16 MXU scoring carries ~1e-3 relative error in the cosine scores
    assert jnp.allclose(loss, ref, atol=1e-2, rtol=1e-2), (loss, ref)

    print("KERNEL_OK")
</pallas_src>

<mosaic_0001>
module attributes {stable_mosaic.version = 11 : i64} {
  func.func @bpr_loss_kernel(%arg0: i32, %arg1: memref<16x128xf32, #tpu.memory_space<vmem>>, %arg2: memref<32x128xbf16, #tpu.memory_space<vmem>>, %arg3: memref<16x3xi32, #tpu.memory_space<vmem>>, %arg4: memref<1x1x1xf32, #tpu.memory_space<vmem>>) attributes {dimension_semantics = [#tpu.dimension_semantics<parallel>], iteration_bounds = array<i64: 2>, scalar_prefetch = 0 : i64, scratch_operands = 0 : i64, tpu.core_type = #tpu.core_type<tc>, window_params = [{transform_indices = @transform_0, window_bounds = array<i64: 16, 128>}, {pipeline_mode = #tpu.pipeline_mode<synchronous>, transform_indices = @transform_1, window_bounds = array<i64: 32, 128>}, {transform_indices = @transform_2, window_bounds = array<i64: 16, 3>}, {transform_indices = @transform_3, window_bounds = array<i64: 1, 1, 1>}]} {
    %c0 = arith.constant 0 : index
    %c0_0 = arith.constant 0 : index
    %0 = vector.load %arg1[%c0, %c0_0] : memref<16x128xf32, #tpu.memory_space<vmem>>, vector<16x128xf32>
    %1 = arith.mulf %0, %0 : vector<16x128xf32>
    %cst = arith.constant dense<0.000000e+00> : vector<16xf32>
    %2 = vector.multi_reduction <add>, %1, %cst [1] : vector<16x128xf32> to vector<16xf32>
    %3 = vector.shape_cast %2 : vector<16xf32> to vector<16x1xf32>
    %cst_1 = arith.constant 1.000000e-16 : f32
    %4 = vector.broadcast %cst_1 : f32 to vector<16x1xf32>
    %5 = arith.maximumf %3, %4 : vector<16x1xf32>
    %6 = math.rsqrt %5 : vector<16x1xf32>
    %7 = vector.broadcast %6 : vector<16x1xf32> to vector<16x128xf32>
    %8 = arith.mulf %0, %7 : vector<16x128xf32>
    %c0_2 = arith.constant 0 : index
    %c0_3 = arith.constant 0 : index
    %9 = vector.load %arg2[%c0_2, %c0_3] : memref<32x128xbf16, #tpu.memory_space<vmem>>, vector<32x128xbf16>
    %c16_i32 = arith.constant 16 : i32
    %10 = arith.muli %arg0, %c16_i32 : i32
    %11 = tpu.assume_multiple %10, 16 : i32
    %12 = arith.index_cast %11 : i32 to index
    %c0_4 = arith.constant 0 : index
    %13 = vector.load %arg2[%12, %c0_4] : memref<32x128xbf16, #tpu.memory_space<vmem>>, vector<16x128xbf16>
    %14 = arith.extf %13 : vector<16x128xbf16> to vector<16x128xf32>
    %15 = arith.mulf %8, %14 : vector<16x128xf32>
    %cst_5 = arith.constant dense<0.000000e+00> : vector<16xf32>
    %16 = vector.multi_reduction <add>, %15, %cst_5 [1] : vector<16x128xf32> to vector<16xf32>
    %17 = vector.shape_cast %16 : vector<16xf32> to vector<16x1xf32>
    %18 = arith.truncf %8 : vector<16x128xf32> to vector<16x128xbf16>
    %cst_6 = arith.constant dense<0.000000e+00> : vector<16x32xf32>
    %19 = tpu.matmul %18, %9, %cst_6 {dimension_numbers = #tpu.dot_dimension_numbers<[1], [1], [0], [0], [0, 0, 1, 0], [], []>} : vector<16x128xbf16>, vector<32x128xbf16>, vector<16x32xf32> -> vector<16x32xf32>
    %20 = tpu.iota {dimensions = array<i32: 1>} : vector<16x32xi32>
    %c0_7 = arith.constant 0 : index
    %c0_8 = arith.constant 0 : index
    %21 = vector.load %arg3[%c0_7, %c0_8] : memref<16x3xi32, #tpu.memory_space<vmem>>, vector<16x3xi32>
    %cst_9 = arith.constant 0.000000e+00 : f32
    %22 = vector.broadcast %cst_9 : f32 to vector<16x1xf32>
    %23 = vector.extract_strided_slice %21 {offsets = [0, 0], sizes = [16, 1], strides = [1, 1]} : vector<16x3xi32> to vector<16x1xi32>
    %24 = vector.broadcast %23 : vector<16x1xi32> to vector<16x32xi32>
    %25 = arith.cmpi eq, %20, %24 : vector<16x32xi32>
    %cst_10 = arith.constant 0.000000e+00 : f32
    %26 = vector.broadcast %cst_10 : f32 to vector<16x32xf32>
    %27 = arith.select %25, %19, %26 : vector<16x32xi1>, vector<16x32xf32>
    %cst_11 = arith.constant dense<0.000000e+00> : vector<16xf32>
    %28 = vector.multi_reduction <add>, %27, %cst_11 [1] : vector<16x32xf32> to vector<16xf32>
    %29 = vector.shape_cast %28 : vector<16xf32> to vector<16x1xf32>
    %30 = arith.subf %17, %29 : vector<16x1xf32>
    %cst_12 = arith.constant 0.000000e+00 : f32
    %31 = vector.broadcast %cst_12 : f32 to vector<16x1xf32>
    %32 = arith.subf %31, %30 : vector<16x1xf32>
    %cst_13 = arith.constant 0.000000e+00 : f32
    %33 = vector.broadcast %cst_13 : f32 to vector<16x1xf32>
    %34 = arith.maximumf %32, %33 : vector<16x1xf32>
    %35 = math.absf %30 : vector<16x1xf32>
    %cst_14 = arith.constant 0.000000e+00 : f32
    %36 = vector.broadcast %cst_14 : f32 to vector<16x1xf32>
    %37 = arith.subf %36, %35 : vector<16x1xf32>
    %38 = math.exp %37 : vector<16x1xf32>
    %39 = math.log1p %38 : vector<16x1xf32>
    %40 = arith.addf %34, %39 : vector<16x1xf32>
    %cst_15 = arith.constant 0.000000e+00 : f32
    %41 = vector.broadcast %cst_15 : f32 to vector<16x1xf32>
    %42 = arith.subf %41, %40 : vector<16x1xf32>
    %43 = arith.addf %22, %42 : vector<16x1xf32>
    %44 = vector.extract_strided_slice %21 {offsets = [0, 1], sizes = [16, 1], strides = [1, 1]} : vector<16x3xi32> to vector<16x1xi32>
    %45 = vector.broadcast %44 : vector<16x1xi32> to vector<16x32xi32>
    %46 = arith.cmpi eq, %20, %45 : vector<16x32xi32>
    %cst_16 = arith.constant 0.000000e+00 : f32
    %47 = vector.broadcast %cst_16 : f32 to vector<16x32xf32>
    %48 = arith.select %46, %19, %47 : vector<16x32xi1>, vector<16x32xf32>
    %cst_17 = arith.constant dense<0.000000e+00> : vector<16xf32>
    %49 = vector.multi_reduction <add>, %48, %cst_17 [1] : vector<16x32xf32> to vector<16xf32>
    %50 = vector.shape_cast %49 : vector<16xf32> to vector<16x1xf32>
    %51 = arith.subf %17, %50 : vector<16x1xf32>
    %cst_18 = arith.constant 0.000000e+00 : f32
    %52 = vector.broadcast %cst_18 : f32 to vector<16x1xf32>
    %53 = arith.subf %52, %51 : vector<16x1xf32>
    %cst_19 = arith.constant 0.000000e+00 : f32
    %54 = vector.broadcast %cst_19 : f32 to vector<16x1xf32>
    %55 = arith.maximumf %53, %54 : vector<16x1xf32>
    %56 = math.absf %51 : vector<16x1xf32>
    %cst_20 = arith.constant 0.000000e+00 : f32
    %57 = vector.broadcast %cst_20 : f32 to vector<16x1xf32>
    %58 = arith.subf %57, %56 : vector<16x1xf32>
    %59 = math.exp %58 : vector<16x1xf32>
    %60 = math.log1p %59 : vector<16x1xf32>
    %61 = arith.addf %55, %60 : vector<16x1xf32>
    %cst_21 = arith.constant 0.000000e+00 : f32
    %62 = vector.broadcast %cst_21 : f32 to vector<16x1xf32>
    %63 = arith.subf %62, %61 : vector<16x1xf32>
    %64 = arith.addf %43, %63 : vector<16x1xf32>
    %65 = vector.extract_strided_slice %21 {offsets = [0, 2], sizes = [16, 1], strides = [1, 1]} : vector<16x3xi32> to vector<16x1xi32>
    %66 = vector.broadcast %65 : vector<16x1xi32> to vector<16x32xi32>
    %67 = arith.cmpi eq, %20, %66 : vector<16x32xi32>
    %cst_22 = arith.constant 0.000000e+00 : f32
    %68 = vector.broadcast %cst_22 : f32 to vector<16x32xf32>
    %69 = arith.select %67, %19, %68 : vector<16x32xi1>, vector<16x32xf32>
    %cst_23 = arith.constant dense<0.000000e+00> : vector<16xf32>
    %70 = vector.multi_reduction <add>, %69, %cst_23 [1] : vector<16x32xf32> to vector<16xf32>
    %71 = vector.shape_cast %70 : vector<16xf32> to vector<16x1xf32>
    %72 = arith.subf %17, %71 : vector<16x1xf32>
    %cst_24 = arith.constant 0.000000e+00 : f32
    %73 = vector.broadcast %cst_24 : f32 to vector<16x1xf32>
    %74 = arith.subf %73, %72 : vector<16x1xf32>
    %cst_25 = arith.constant 0.000000e+00 : f32
    %75 = vector.broadcast %cst_25 : f32 to vector<16x1xf32>
    %76 = arith.maximumf %74, %75 : vector<16x1xf32>
    %77 = math.absf %72 : vector<16x1xf32>
    %cst_26 = arith.constant 0.000000e+00 : f32
    %78 = vector.broadcast %cst_26 : f32 to vector<16x1xf32>
    %79 = arith.subf %78, %77 : vector<16x1xf32>
    %80 = math.exp %79 : vector<16x1xf32>
    %81 = math.log1p %80 : vector<16x1xf32>
    %82 = arith.addf %76, %81 : vector<16x1xf32>
    %cst_27 = arith.constant 0.000000e+00 : f32
    %83 = vector.broadcast %cst_27 : f32 to vector<16x1xf32>
    %84 = arith.subf %83, %82 : vector<16x1xf32>
    %85 = arith.addf %64, %84 : vector<16x1xf32>
    %86 = tpu.iota {dimensions = array<i32: 0>} : vector<16x1xi32>
    %87 = vector.broadcast %11 : i32 to vector<16x1xi32>
    %88 = arith.addi %87, %86 : vector<16x1xi32>
    %c20_i32 = arith.constant 20 : i32
    %89 = vector.broadcast %c20_i32 : i32 to vector<16x1xi32>
    %90 = arith.cmpi slt, %88, %89 : vector<16x1xi32>
    %cst_28 = arith.constant 0.000000e+00 : f32
    %91 = vector.broadcast %cst_28 : f32 to vector<16x1xf32>
    %92 = arith.select %90, %85, %91 : vector<16x1xi1>, vector<16x1xf32>
    %93 = vector.shape_cast %92 : vector<16x1xf32> to vector<1x16x1xf32>
    %cst_29 = arith.constant dense<0.000000e+00> : vector<1xf32>
    %94 = vector.multi_reduction <add>, %93, %cst_29 [1, 2] : vector<1x16x1xf32> to vector<1xf32>
    %95 = vector.shape_cast %94 : vector<1xf32> to vector<1x1x1xf32>
    %96 = vector.extract %95[0, 0, 0] : f32 from vector<1x1x1xf32>
    %97 = vector.broadcast %96 : f32 to vector<1x1x1xf32>
    %c0_30 = arith.constant 0 : index
    %c0_31 = arith.constant 0 : index
    %c0_32 = arith.constant 0 : index
    %98 = vector.load %arg4[%c0_30, %c0_31, %c0_32] : memref<1x1x1xf32, #tpu.memory_space<vmem>>, vector<1x1x1xf32>
    tpu.vector_store %arg4[%c0_30, %c0_31, %c0_32], %97 {strides = array<i32>} : memref<1x1x1xf32, #tpu.memory_space<vmem>>, vector<1x1x1xf32>,
    return
  }
  func.func @transform_0(%arg0: i32) -> (i32, i32) {
    %c0_i32 = arith.constant 0 : i32
    %c0_i32_0 = arith.constant 0 : i32
    return %arg0, %c0_i32 : i32, i32
  }
  func.func @transform_1(%arg0: i32) -> (i32, i32) {
    %c0_i32 = arith.constant 0 : i32
    %c0_i32_0 = arith.constant 0 : i32
    %c0_i32_1 = arith.constant 0 : i32
    return %c0_i32, %c0_i32_0 : i32, i32
  }
  func.func @transform_2(%arg0: i32) -> (i32, i32) {
    %c0_i32 = arith.constant 0 : i32
    %c0_i32_0 = arith.constant 0 : i32
    return %arg0, %c0_i32 : i32, i32
  }
  func.func @transform_3(%arg0: i32) -> (i32, i32, i32) {
    %c0_i32 = arith.constant 0 : i32
    %c0_i32_0 = arith.constant 0 : i32
    %c0_i32_1 = arith.constant 0 : i32
    return %arg0, %c0_i32, %c0_i32_0 : i32, i32, i32
  }
}

module attributes {stable_mosaic.version = 11 : i64} {
  func.func @bpr_loss_kernel(%arg0: i32, %arg1: memref<16x128xf32, #tpu.memory_space<vmem>>, %arg2: memref<32x128xbf16, #tpu.memory_space<vmem>>, %arg3: memref<16x3xi32, #tpu.memory_space<vmem>>, %arg4: memref<1x1x1xf32, #tpu.memory_space<vmem>>) attributes {dimension_semantics = [#tpu.dimension_semantics<parallel>], iteration_bounds = array<i64: 2>, scalar_prefetch = 0 : i64, scratch_operands = 0 : i64, tpu.core_type = #tpu.core_type<tc>, window_params = [{transform_indices = @transform_0, window_bounds = array<i64: 16, 128>}, {pipeline_mode = #tpu.pipeline_mode<synchronous>, transform_indices = @transform_1, window_bounds = array<i64: 32, 128>}, {transform_indices = @transform_2, window_bounds = array<i64: 16, 3>}, {transform_indices = @transform_3, window_bounds = array<i64: 1, 1, 1>}]} {
    %c0 = arith.constant 0 : index
    %c0_0 = arith.constant 0 : index
    %0 = vector.load %arg1[%c0, %c0_0] : memref<16x128xf32, #tpu.memory_space<vmem>>, vector<16x128xf32>
    %1 = arith.mulf %0, %0 : vector<16x128xf32>
    %cst = arith.constant dense<0.000000e+00> : vector<16xf32>
    %2 = vector.multi_reduction <add>, %1, %cst [1] : vector<16x128xf32> to vector<16xf32>
    %3 = vector.shape_cast %2 : vector<16xf32> to vector<16x1xf32>
    %cst_1 = arith.constant 1.000000e-16 : f32
    %4 = vector.broadcast %cst_1 : f32 to vector<16x1xf32>
    %5 = arith.maximumf %3, %4 : vector<16x1xf32>
    %6 = math.rsqrt %5 : vector<16x1xf32>
    %7 = vector.broadcast %6 : vector<16x1xf32> to vector<16x128xf32>
    %8 = arith.mulf %0, %7 : vector<16x128xf32>
    %c0_2 = arith.constant 0 : index
    %c0_3 = arith.constant 0 : index
    %9 = vector.load %arg2[%c0_2, %c0_3] : memref<32x128xbf16, #tpu.memory_space<vmem>>, vector<32x128xbf16>
    %c16_i32 = arith.constant 16 : i32
    %10 = arith.muli %arg0, %c16_i32 : i32
    %11 = tpu.assume_multiple %10, 16 : i32
    %12 = arith.index_cast %11 : i32 to index
    %c0_4 = arith.constant 0 : index
    %13 = vector.load %arg2[%12, %c0_4] : memref<32x128xbf16, #tpu.memory_space<vmem>>, vector<16x128xbf16>
    %14 = arith.extf %13 : vector<16x128xbf16> to vector<16x128xf32>
    %15 = arith.mulf %8, %14 : vector<16x128xf32>
    %cst_5 = arith.constant dense<0.000000e+00> : vector<16xf32>
    %16 = vector.multi_reduction <add>, %15, %cst_5 [1] : vector<16x128xf32> to vector<16xf32>
    %17 = vector.shape_cast %16 : vector<16xf32> to vector<16x1xf32>
    %18 = arith.truncf %8 : vector<16x128xf32> to vector<16x128xbf16>
    %cst_6 = arith.constant dense<0.000000e+00> : vector<16x32xf32>
    %19 = tpu.matmul %18, %9, %cst_6 {dimension_numbers = #tpu.dot_dimension_numbers<[1], [1], [0], [0], [0, 0, 1, 0], [], []>} : vector<16x128xbf16>, vector<32x128xbf16>, vector<16x32xf32> -> vector<16x32xf32>
    %20 = tpu.iota {dimensions = array<i32: 1>} : vector<16x32xi32>
    %c0_7 = arith.constant 0 : index
    %c0_8 = arith.constant 0 : index
    %21 = vector.load %arg3[%c0_7, %c0_8] : memref<16x3xi32, #tpu.memory_space<vmem>>, vector<16x3xi32>
    %cst_9 = arith.constant 0.000000e+00 : f32
    %22 = vector.broadcast %cst_9 : f32 to vector<16x1xf32>
    %23 = vector.extract_strided_slice %21 {offsets = [0, 0], sizes = [16, 1], strides = [1, 1]} : vector<16x3xi32> to vector<16x1xi32>
    %24 = vector.broadcast %23 : vector<16x1xi32> to vector<16x32xi32>
    %25 = arith.cmpi eq, %20, %24 : vector<16x32xi32>
    %cst_10 = arith.constant 0.000000e+00 : f32
    %26 = vector.broadcast %cst_10 : f32 to vector<16x32xf32>
    %27 = arith.select %25, %19, %26 : vector<16x32xi1>, vector<16x32xf32>
    %cst_11 = arith.constant dense<0.000000e+00> : vector<16xf32>
    %28 = vector.multi_reduction <add>, %27, %cst_11 [1] : vector<16x32xf32> to vector<16xf32>
    %29 = vector.shape_cast %28 : vector<16xf32> to vector<16x1xf32>
    %30 = arith.subf %17, %29 : vector<16x1xf32>
    %cst_12 = arith.constant 0.000000e+00 : f32
    %31 = vector.broadcast %cst_12 : f32 to vector<16x1xf32>
    %32 = arith.subf %31, %30 : vector<16x1xf32>
    %cst_13 = arith.constant 0.000000e+00 : f32
    %33 = vector.broadcast %cst_13 : f32 to vector<16x1xf32>
    %34 = arith.maximumf %32, %33 : vector<16x1xf32>
    %35 = math.absf %30 : vector<16x1xf32>
    %cst_14 = arith.constant 0.000000e+00 : f32
    %36 = vector.broadcast %cst_14 : f32 to vector<16x1xf32>
    %37 = arith.subf %36, %35 : vector<16x1xf32>
    %38 = math.exp %37 : vector<16x1xf32>
    %39 = math.log1p %38 : vector<16x1xf32>
    %40 = arith.addf %34, %39 : vector<16x1xf32>
    %cst_15 = arith.constant 0.000000e+00 : f32
    %41 = vector.broadcast %cst_15 : f32 to vector<16x1xf32>
    %42 = arith.subf %41, %40 : vector<16x1xf32>
    %43 = arith.addf %22, %42 : vector<16x1xf32>
    %44 = vector.extract_strided_slice %21 {offsets = [0, 1], sizes = [16, 1], strides = [1, 1]} : vector<16x3xi32> to vector<16x1xi32>
    %45 = vector.broadcast %44 : vector<16x1xi32> to vector<16x32xi32>
    %46 = arith.cmpi eq, %20, %45 : vector<16x32xi32>
    %cst_16 = arith.constant 0.000000e+00 : f32
    %47 = vector.broadcast %cst_16 : f32 to vector<16x32xf32>
    %48 = arith.select %46, %19, %47 : vector<16x32xi1>, vector<16x32xf32>
    %cst_17 = arith.constant dense<0.000000e+00> : vector<16xf32>
    %49 = vector.multi_reduction <add>, %48, %cst_17 [1] : vector<16x32xf32> to vector<16xf32>
    %50 = vector.shape_cast %49 : vector<16xf32> to vector<16x1xf32>
    %51 = arith.subf %17, %50 : vector<16x1xf32>
    %cst_18 = arith.constant 0.000000e+00 : f32
    %52 = vector.broadcast %cst_18 : f32 to vector<16x1xf32>
    %53 = arith.subf %52, %51 : vector<16x1xf32>
    %cst_19 = arith.constant 0.000000e+00 : f32
    %54 = vector.broadcast %cst_19 : f32 to vector<16x1xf32>
    %55 = arith.maximumf %53, %54 : vector<16x1xf32>
    %56 = math.absf %51 : vector<16x1xf32>
    %cst_20 = arith.constant 0.000000e+00 : f32
    %57 = vector.broadcast %cst_20 : f32 to vector<16x1xf32>
    %58 = arith.subf %57, %56 : vector<16x1xf32>
    %59 = math.exp %58 : vector<16x1xf32>
    %60 = math.log1p %59 : vector<16x1xf32>
    %61 = arith.addf %55, %60 : vector<16x1xf32>
    %cst_21 = arith.constant 0.000000e+00 : f32
    %62 = vector.broadcast %cst_21 : f32 to vector<16x1xf32>
    %63 = arith.subf %62, %61 : vector<16x1xf32>
    %64 = arith.addf %43, %63 : vector<16x1xf32>
    %65 = vector.extract_strided_slice %21 {offsets = [0, 2], sizes = [16, 1], strides = [1, 1]} : vector<16x3xi32> to vector<16x1xi32>
    %66 = vector.broadcast %65 : vector<16x1xi32> to vector<16x32xi32>
    %67 = arith.cmpi eq, %20, %66 : vector<16x32xi32>
    %cst_22 = arith.constant 0.000000e+00 : f32
    %68 = vector.broadcast %cst_22 : f32 to vector<16x32xf32>
    %69 = arith.select %67, %19, %68 : vector<16x32xi1>, vector<16x32xf32>
    %cst_23 = arith.constant dense<0.000000e+00> : vector<16xf32>
    %70 = vector.multi_reduction <add>, %69, %cst_23 [1] : vector<16x32xf32> to vector<16xf32>
    %71 = vector.shape_cast %70 : vector<16xf32> to vector<16x1xf32>
    %72 = arith.subf %17, %71 : vector<16x1xf32>
    %cst_24 = arith.constant 0.000000e+00 : f32
    %73 = vector.broadcast %cst_24 : f32 to vector<16x1xf32>
    %74 = arith.subf %73, %72 : vector<16x1xf32>
    %cst_25 = arith.constant 0.000000e+00 : f32
    %75 = vector.broadcast %cst_25 : f32 to vector<16x1xf32>
    %76 = arith.maximumf %74, %75 : vector<16x1xf32>
    %77 = math.absf %72 : vector<16x1xf32>
    %cst_26 = arith.constant 0.000000e+00 : f32
    %78 = vector.broadcast %cst_26 : f32 to vector<16x1xf32>
    %79 = arith.subf %78, %77 : vector<16x1xf32>
    %80 = math.exp %79 : vector<16x1xf32>
    %81 = math.log1p %80 : vector<16x1xf32>
    %82 = arith.addf %76, %81 : vector<16x1xf32>
    %cst_27 = arith.constant 0.000000e+00 : f32
    %83 = vector.broadcast %cst_27 : f32 to vector<16x1xf32>
    %84 = arith.subf %83, %82 : vector<16x1xf32>
    %85 = arith.addf %64, %84 : vector<16x1xf32>
    %86 = tpu.iota {dimensions = array<i32: 0>} : vector<16x1xi32>
    %87 = vector.broadcast %11 : i32 to vector<16x1xi32>
    %88 = arith.addi %87, %86 : vector<16x1xi32>
    %c20_i32 = arith.constant 20 : i32
    %89 = vector.broadcast %c20_i32 : i32 to vector<16x1xi32>
    %90 = arith.cmpi slt, %88, %89 : vector<16x1xi32>
    %cst_28 = arith.constant 0.000000e+00 : f32
    %91 = vector.broadcast %cst_28 : f32 to vector<16x1xf32>
    %92 = arith.select %90, %85, %91 : vector<16x1xi1>, vector<16x1xf32>
    %93 = vector.shape_cast %92 : vector<16x1xf32> to vector<1x16x1xf32>
    %cst_29 = arith.constant dense<0.000000e+00> : vector<1xf32>
    %94 = vector.multi_reduction <add>, %93, %cst_29 [1, 2] : vector<1x16x1xf32> to vector<1xf32>
    %95 = vector.shape_cast %94 : vector<1xf32> to vector<1x1x1xf32>
    %96 = vector.extract %95[0, 0, 0] : f32 from vector<1x1x1xf32>
    %97 = vector.broadcast %96 : f32 to vector<1x1x1xf32>
    %c0_30 = arith.constant 0 : index
    %c0_31 = arith.constant 0 : index
    %c0_32 = arith.constant 0 : index
    %98 = vector.load %arg4[%c0_30, %c0_31, %c0_32] : memref<1x1x1xf32, #tpu.memory_space<vmem>>, vector<1x1x1xf32>
    tpu.vector_store %arg4[%c0_30, %c0_31, %c0_32], %97 {strides = array<i32>} : memref<1x1x1xf32, #tpu.memory_space<vmem>>, vector<1x1x1xf32>,
    return
  }
  func.func @transform_0(%arg0: i32) -> (i32, i32) {
    %c0_i32 = arith.constant 0 : i32
    %c0_i32_0 = arith.constant 0 : i32
    return %arg0, %c0_i32 : i32, i32
  }
  func.func @transform_1(%arg0: i32) -> (i32, i32) {
    %c0_i32 = arith.constant 0 : i32
    %c0_i32_0 = arith.constant 0 : i32
    %c0_i32_1 = arith.constant 0 : i32
    return %c0_i32, %c0_i32_0 : i32, i32
  }
  func.func @transform_2(%arg0: i32) -> (i32, i32) {
    %c0_i32 = arith.constant 0 : i32
    %c0_i32_0 = arith.constant 0 : i32
    return %arg0, %c0_i32 : i32, i32
  }
  func.func @transform_3(%arg0: i32) -> (i32, i32, i32) {
    %c0_i32 = arith.constant 0 : i32
    %c0_i32_0 = arith.constant 0 : i32
    %c0_i32_1 = arith.constant 0 : i32
    return %arg0, %c0_i32, %c0_i32_0 : i32, i32, i32
  }
}

</mosaic_0001>

<llo_original>
// kernel: tpu_custom_call.1
$region0: #{tpu_custom_call.1}
  #allocation0 [shape = 'u32[]', space=smem, size = 0x4, offset = 0x4, fixed_abs, tag = 'smem constant byte address 0x4 - core index']
  #allocation1 [shape = 'u32[144,128]{1,0:T(1,128)}', space=vmem, size = 0x12000, scoped, tag = 'internal scratch']
  %s0 = inlined_call_operand.vmem [shape: f32[32,128], index: 0, kind: input, shape index: {}]
  %s1 = inlined_call_operand.hbm [shape: bf16[32,128], index: 1, kind: input, shape index: {}]
  %s2 = inlined_call_operand.vmem [shape: s32[32,3], index: 2, kind: input, shape index: {}]
  %s3 = inlined_call_operand.vmem [shape: f32[2,1,1], index: 3, kind: output, shape index: {}]
  %s4 = sld [smem:[#allocation0]]
  $region49: #{tpu_custom_call.1} parent=0
    _
  %s6 = ssub.s32 1, %s4
  %s7 = scalar_select 0, %s6, %s4
  $region1: #{tpu_custom_call.1} parent=0
    #allocation2 [shape = 'u8[8192]{0}', space=vmem, size = 0x2000, scoped, tag = 'input window, operand 1, single buffered']
    #allocation3 [shape = 's32[2]{0}', space=sflag, size = 0x8, scoped, tag = 'scoped memory for tpu_custom_call.1']
    %8 = vsyncpa [#allocation3], 0
    loop: start=0, step=1, limit=4
    $region2: #{tpu_custom_call.1} parent=1 // loop_pre_header
      _
    $region3: #{tpu_custom_call.1} parent=1 // loop_header
      %s10 = sphi 0, %s14
      %p11 = scmp.ge.s32.totalorder %s10, 4
      %s20 = sphi 0, %s22
      %s23 = sphi 0, %s20
      %s24 = sphi 0, %s23
      %s40 = sphi 0, %s24
      %s44 = sphi 0, %s44
      %s46 = sphi 0, %s44
      %s47 = sphi 0, %s46
      %s61 = sphi 0, %s47
      %s67 = sphi 0, %s69
      %s70 = sphi 0, %s67
      %s71 = sphi 0, %s70
      %s87 = sphi 0, %s71
      %s93 = sphi 0, %s95
      %s96 = sphi 0, %s93
      %s97 = sphi 0, %s96
      %s113 = sphi 0, %s97
    $region4: #{tpu_custom_call.1} parent=1 // loop_header_branch
      %13 = sbr.rel (%p11) target = $region8
    $region5: #{tpu_custom_call.1} parent=1 // loop_body
      %s15 = ssub.s32 %s10, 1
      %s16 = ssub.s32 %s10, 2
      %s17 = sadd.s32 %s10, 1
      %s18 = ssub.s32 %s10, %s17
      %p19 = scmp.eq.s32.totalorder %s18, 0
      %s21 = sadd.s32 %s20, 1
      %s22 = scalar_select %p19, %s20, %s21
      %p25 = pneg %p19
      %p26 = scmp.eq.s32.totalorder %s10, 1
      %p27 = por %p25, %p26
      %p28 = scmp.ne.s32.totalorder %s20, %s23
      %p29 = scmp.eq.s32.totalorder %s10, 0
      %p30 = por %p28, %p29
      %p31 = scmp.ne.s32.totalorder %s20, %s23
      %p32 = scmp.eq.s32.totalorder %s15, 1
      %p33 = por %p31, %p32
      %p34 = scmp.ne.s32.totalorder %s23, %s24
      %p35 = scmp.eq.s32.totalorder %s15, 0
      %p36 = por %p34, %p35
      %p37 = scmp.ne.s32.totalorder %s23, %s24
      %p38 = scmp.eq.s32.totalorder %s16, 1
      %p39 = por %p37, %p38
      %p41 = scmp.ne.s32.totalorder %s24, %s40
      %p42 = scmp.eq.s32.totalorder %s16, 0
      %p43 = por %p41, %p42
      %s45 = sadd.s32 %s44, 1
      %p48 = scmp.eq.s32.totalorder %s10, 1
      %p49 = scmp.ne.s32.totalorder %s44, %s46
      %p50 = scmp.eq.s32.totalorder %s10, 0
      %p51 = por %p49, %p50
      %p52 = scmp.ne.s32.totalorder %s44, %s46
      %p53 = scmp.eq.s32.totalorder %s15, 1
      %p54 = por %p52, %p53
      %p55 = scmp.ne.s32.totalorder %s46, %s47
      %p56 = scmp.eq.s32.totalorder %s15, 0
      %p57 = por %p55, %p56
      %p58 = scmp.ne.s32.totalorder %s46, %s47
      %p59 = scmp.eq.s32.totalorder %s16, 1
      %p60 = por %p58, %p59
      %p62 = scmp.ne.s32.totalorder %s47, %s61
      %p63 = scmp.eq.s32.totalorder %s16, 0
      %p64 = por %p62, %p63
      %s65 = ssub.s32 %s10, %s17
      %p66 = scmp.eq.s32.totalorder %s65, 0
      %s68 = sadd.s32 %s67, 1
      %s69 = scalar_select %p66, %s67, %s68
      %p72 = pneg %p66
      %p73 = scmp.eq.s32.totalorder %s10, 1
      %p74 = por %p72, %p73
      %p75 = scmp.ne.s32.totalorder %s67, %s70
      %p76 = scmp.eq.s32.totalorder %s10, 0
      %p77 = por %p75, %p76
      %p78 = scmp.ne.s32.totalorder %s67, %s70
      %p79 = scmp.eq.s32.totalorder %s15, 1
      %p80 = por %p78, %p79
      %p81 = scmp.ne.s32.totalorder %s70, %s71
      %p82 = scmp.eq.s32.totalorder %s15, 0
      %p83 = por %p81, %p82
      %p84 = scmp.ne.s32.totalorder %s70, %s71
      %p85 = scmp.eq.s32.totalorder %s16, 1
      %p86 = por %p84, %p85
      %p88 = scmp.ne.s32.totalorder %s71, %s87
      %p89 = scmp.eq.s32.totalorder %s16, 0
      %p90 = por %p88, %p89
      %s91 = ssub.s32 %s10, %s17
      %p92 = scmp.eq.s32.totalorder %s91, 0
      %s94 = sadd.s32 %s93, 1
      %s95 = scalar_select %p92, %s93, %s94
      %p98 = pneg %p92
      %p99 = scmp.eq.s32.totalorder %s10, 1
      %p100 = por %p98, %p99
      %p101 = scmp.ne.s32.totalorder %s93, %s96
      %p102 = scmp.eq.s32.totalorder %s10, 0
      %p103 = por %p101, %p102
      %p104 = scmp.ne.s32.totalorder %s93, %s96
      %p105 = scmp.eq.s32.totalorder %s15, 1
      %p106 = por %p104, %p105
      %p107 = scmp.ne.s32.totalorder %s96, %s97
      %p108 = scmp.eq.s32.totalorder %s15, 0
      %p109 = por %p107, %p108
      %p110 = scmp.ne.s32.totalorder %s96, %s97
      %p111 = scmp.eq.s32.totalorder %s16, 1
      %p112 = por %p110, %p111
      %p114 = scmp.ne.s32.totalorder %s97, %s113
      %p115 = scmp.eq.s32.totalorder %s16, 0
      %p116 = por %p114, %p115
      %p117 = scmp.le.s32.totalorder 1, %s10
      %p118 = scmp.lt.s32.totalorder %s10, 3
      %p119 = pnand %p117, %p118
      %p120 = pneg %p119
      // Predicated region
      $region9: #{tpu_custom_call.1} parent=5 // pred_check
        _
      $region10: #{tpu_custom_call.1} parent=5 // pred_check_branch
        %122 = sbr.rel (%p119) target = $region12
      $region11: #{tpu_custom_call.1} parent=5 // pred_region
        %s123 = ssub.s32 %s10, 1
        // Predicated region
        $region13: #{tpu_custom_call.1} parent=11 // pred_check
          %p124 = pneg %p57
        $region14: #{tpu_custom_call.1} parent=11 // pred_check_branch
          %126 = sbr.rel (%p124) target = $region16
        $region15: #{tpu_custom_call.1} parent=11 // pred_region
          %s128 = ssub.s32 256, 256
          %129 = vsyncadd [#allocation3], %s128
          %s130 = sshll.u32 [#allocation2], 4
          %s131 = int_to_ptr.vmem [resolvable:$true] %s130
          %136 = dma.hbm_to_vmem [thread:$0]  %s1, 256, %s131, [#allocation3], 64, 64, 4
        $region16: #{tpu_custom_call.1} parent=11 // pred_fallthru
          _
      $region12: #{tpu_custom_call.1} parent=5 // pred_fallthru
        _
      %p137 = scmp.lt.s32.totalorder %s10, 2
      // Predicated region
      $region17: #{tpu_custom_call.1} parent=5 // pred_check
        %p138 = pneg %p137
      $region18: #{tpu_custom_call.1} parent=5 // pred_check_branch
        %140 = sbr.rel (%p138) target = $region20
      $region19: #{tpu_custom_call.1} parent=5 // pred_region
        // Predicated region
        $region21: #{tpu_custom_call.1} parent=19 // pred_check
          %p141 = pneg %p30
        $region22: #{tpu_custom_call.1} parent=19 // pred_check_branch
          %143 = sbr.rel (%p141) target = $region24
        $region23: #{tpu_custom_call.1} parent=19 // pred_region
          %s144 = smul.u32 2, %s10
          %p145 = scmp.lt.s32.totalorder %s144, 3
          %s146 = scalar_select %p145, %s144, 3
          %s147 = smul.addr %s146, 8
          %s148 = scalar_lea.vmem %s0, %s147
          %s149 = smul.u32 2, %s10
        $region24: #{tpu_custom_call.1} parent=19 // pred_fallthru
          _
        // Predicated region
        $region25: #{tpu_custom_call.1} parent=19 // pred_check
          %p150 = pneg %p77
        $region26: #{tpu_custom_call.1} parent=19 // pred_check_branch
          %152 = sbr.rel (%p150) target = $region28
        $region27: #{tpu_custom_call.1} parent=19 // pred_region
          %s153 = smul.u32 2, %s10
          %p154 = scmp.lt.s32.totalorder %s153, 3
          %s155 = scalar_select %p154, %s153, 3
          %s156 = smul.addr %s155, 8
          %s157 = scalar_lea.vmem %s2, %s156
          %s158 = smul.u32 2, %s10
        $region28: #{tpu_custom_call.1} parent=19 // pred_fallthru
          _
      $region20: #{tpu_custom_call.1} parent=5 // pred_fallthru
        _
      %p159 = scmp.le.s32.totalorder 1, %s10
      %p160 = scmp.lt.s32.totalorder %s10, 3
      %p161 = pnand %p159, %p160
      %p162 = pneg %p161
      // Predicated region
      $region29: #{tpu_custom_call.1} parent=5 // pred_check
        _
      $region30: #{tpu_custom_call.1} parent=5 // pred_check_branch
        %164 = sbr.rel (%p161) target = $region32
      $region31: #{tpu_custom_call.1} parent=5 // pred_region
        %s165 = ssub.s32 %s10, 1
        // Predicated region
        $region33: #{tpu_custom_call.1} parent=31 // pred_check
          %p166 = pneg %p57
        $region34: #{tpu_custom_call.1} parent=31 // pred_check_branch
          %168 = sbr.rel (%p166) target = $region36
        $region35: #{tpu_custom_call.1} parent=31 // pred_region
          %169 = dma.done [#allocation3], 256
        $region36: #{tpu_custom_call.1} parent=31 // pred_fallthru
          _
        %s170 = smul.u32 2, %s15
        %p171 = scmp.lt.s32.totalorder %s170, 3
        %s172 = scalar_select %p171, %s170, 3
        %s173 = smul.addr %s172, 8
        %s174 = scalar_lea.vmem %s0, %s173
        %p175 = pneg %p36
        %p176 = pneg %p33
        %p177 = pneg %p57
        %p178 = pneg %p54
        %s179 = smul.u32 2, %s15
        %p180 = scmp.lt.s32.totalorder %s179, 3
        %s181 = scalar_select %p180, %s179, 3
        %s182 = smul.addr %s181, 8
        %s183 = scalar_lea.vmem %s2, %s182
        %p184 = pneg %p83
        %p185 = pneg %p80
        %p186 = pneg %p109
        %p187 = pneg %p106
        %p188 = scmp.lt.s32.totalorder %s15, 1
        %s189 = scalar_select %p188, %s15, 1
        %s190 = scalar_lea.vmem %s3, %s189
        %s191 = smul.u32 2, %s15
        %p192 = scmp.lt.s32.totalorder %s191, 3
        %s193 = scalar_select %p192, %s191, 3
        %s194 = smul.addr %s193, 8
        %s195 = scalar_lea.vmem %s0, %s194
        %s196 = smul.u32 2, %s15
        %s197 = smul.u32 2, %s15
        %p198 = scmp.lt.s32.totalorder %s197, 3
        %s199 = scalar_select %p198, %s197, 3
        %s200 = smul.addr %s199, 8
        %s201 = scalar_lea.vmem %s2, %s200
        %s202 = smul.u32 2, %s15
        %p203 = scmp.lt.s32.totalorder %s15, 1
        %s204 = scalar_select %p203, %s15, 1
        %s205 = scalar_lea.vmem %s3, %s204
        %v207 = vld [vmem:[%s195] sm:$0xff]
        %v208 = vld [vmem:[%s195 + $0x8] sm:$0xff]
        %v209 = vmul.f32 %v207, %v207
        %v210 = vmul.f32 %v208, %v208
        %211 = vadd.xlane.f32.xlu0 %v209
        %v212 = vpop.xlane.xlu0 %211
        %213 = vadd.xlane.f32.xlu0 %v210
        %v214 = vpop.xlane.xlu0 %213
        %v215 = vmax.f32 %v212, 1e-16
        %v216 = vmax.f32 %v214, 1e-16
        %v217 = vrsqrt.pop %v215
        %v218 = vrsqrt.pop %v216
        %v219 = vmul.f32 %v207, %v217
        %v220 = vmul.f32 %v208, %v218
        %v221 = vld [vmem:[#allocation2] sm:$0xf]
        %v222 = vld [vmem:[#allocation2 + $0x4] sm:$0xf]
        %v223 = vld [vmem:[#allocation2 + $0x8] sm:$0xf]
        %v224 = vld [vmem:[#allocation2 + $0xc] sm:$0xf]
        %s225 = smul.u32 %s15, 16
        %s226 = sshra.s32 %s225, 3
        %s227 = sand.u32 %s225, 7
        %s228 = smul.addr %s226, 4
        %s229 = scalar_lea.vmem [#allocation2], %s228
        %v230 = vld [vmem:[%s229] sm:$0xf]
        %v231 = vld [vmem:[%s229 + $0x4] sm:$0xf]
        %v232 = vunpack.c.l.bf16 %v230
        %v233 = vunpack.c.l.bf16 %v231
        %v234 = vmul.f32 %v219, %v232
        %v235 = vmul.f32 %v220, %v233
        %236 = vadd.xlane.f32.xlu0 %v234
        %v237 = vpop.xlane.xlu0 %236
        %238 = vadd.xlane.f32.xlu0 %v235
        %v239 = vpop.xlane.xlu0 %238
        %v240 = vpack.c.bf16 %v220, %v219
        %v245 = vunpack.c.l.b16 %v221
        %v246 = vunpack.c.l.b16 %v222
        %v247 = vunpack.c.l.b16 %v223
        %v248 = vunpack.c.l.b16 %v224
        %v249 = vpack.c.b16 %v246, %v245
        %v250 = vpack.c.b16 %v248, %v247
        %253 = vmatprep.subr.bf16.mxu0 0
        %254 = vmatpush1.bf16.xpose.msra.mxu0 0
        %255 = vmatprep.subr.bf16.mxu0 0
        %256 = vmatpush1.bf16.xpose.msra.mxu0 0
        %257 = vmatprep.subr.bf16.mxu0 0
        %258 = vmatpush1.bf16.xpose.msra.mxu0 0
        %259 = vmatprep.subr.bf16.mxu0 0
        %260 = vmatpush1.bf16.xpose.msra.mxu0 0
        %261 = vmatprep.subr.bf16.mxu0 0
        %262 = vmatpush1.bf16.xpose.msra.mxu0 0
        %263 = vmatprep.subr.bf16.mxu0 0
        %264 = vmatpush1.bf16.xpose.msra.mxu0 0
        %265 = vmatprep.subr.bf16.mxu0 0
        %266 = vmatpush1.bf16.xpose.msra.mxu0 %v250
        %267 = vmatprep.subr.bf16.mxu0 0
        %268 = vmatpush1.bf16.xpose.msra.mxu0 %v249
        %269 = vmatprep.subr.bf16.mxu0 0
        %270 = vmatpush2.bf16.xpose.msra.mxu0 0
        %271 = vmatprep.subr.bf16.mxu0 0
        %272 = vmatpush2.bf16.xpose.msra.mxu0 0
        %273 = vmatprep.subr.bf16.mxu0 0
        %274 = vmatpush2.bf16.xpose.msra.mxu0 0
        %275 = vmatprep.subr.bf16.mxu0 0
        %276 = vmatpush2.bf16.xpose.msra.mxu0 0
        %277 = vmatprep.subr.bf16.mxu0 0
        %278 = vmatpush2.bf16.xpose.msra.mxu0 0
        %279 = vmatprep.subr.bf16.mxu0 0
        %280 = vmatpush2.bf16.xpose.msra.mxu0 0
        %281 = vmatprep.subr.bf16.mxu0 0
        %282 = vmatpush2.bf16.xpose.msra.mxu0 0
        %283 = vmatprep.subr.bf16.mxu0 0
        %284 = vmatpush2.bf16.xpose.msra.mxu0 0
        %285 = vmatprep.mubr.bf16.mxu0 0
        %286 = vmatmul.mubr.bf16.gmra.mxu0 %v240
        %v287 = vpop.f32.mrf.mxu0
        %v288 = vadd.f32 0.0, %v287
        %v289 = vpop.f32.mrf.mxu0
        %v290 = vpop.f32.mrf.mxu0
        %v291 = vadd.f32 0.0, %v290
        %v292 = vpop.f32.mrf.mxu0
        %293 = vdwg.mxu0
        %v294 = vlaneseq
        %v295 = vand.u32 %v294, 127
        %v296 = vld [vmem:[%s201] sm:$0xff]
        %v297 = vld [vmem:[%s201 + $0x8] sm:$0xff]
        %298 = vset.pattern.permute.xlu0 0
        %299 = vperm.xlu0 %298, %v296
        %v300 = vpop.permute.xlu0 %299
        %301 = vset.pattern.permute.xlu0 0
        %302 = vperm.xlu0 %301, %v297
        %v303 = vpop.permute.xlu0 %302
        %vm304 = vcmp.eq.s32.totalorder %v295, %v300
        %vm305 = vcmp.eq.s32.totalorder %v295, %v303
        %v306 = vsel %vm304, %v288, 0.0
        %v307 = vsel %vm305, %v291, 0.0
        %vm308 = vcmask 261120
        %v309 = vsel %vm308, %v306, 0.0
        %310 = vadd.xlane.f32.xlu0 %v309
        %v311 = vpop.xlane.xlu0 %310
        %v312 = vsel %vm308, %v307, 0.0
        %313 = vadd.xlane.f32.xlu0 %v312
        %v314 = vpop.xlane.xlu0 %313
        %v315 = vsub.f32 %v237, %v311
        %v316 = vsub.f32 %v239, %v314
        %v317 = vsub.f32 0.0, %v315
        %v318 = vsub.f32 0.0, %v316
        %v319 = vmax.f32 %v317, 0.0
        %v320 = vmax.f32 %v318, 0.0
        %v321 = vand.u32 2147483647, %v315
        %v322 = vand.u32 2147483647, %v316
        %v323 = vsub.f32 0.0, %v321
        %v324 = vsub.f32 0.0, %v322
        %v325 = vmul.f32 %v323, 1.442695
        %v326 = vpow.pop %v325
        %v327 = vmul.f32 %v324, 1.442695
        %v328 = vpow.pop %v327
        %v329 = vadd.f32 %v326, 1.0
        %v330 = vlog2.pop %v329
        %v331 = vmul.f32 %v330, 0.6931472
        %v332 = vmul.f32 -0.5, %v326
        %v333 = vadd.f32 %v332, 1.0
        %v334 = vmul.f32 %v333, %v326
        %v335 = vand.u32 2147483647, %v326
        %vm336 = vcmp.lt.f32.partialorder %v335, 0.0004427343
        %v337 = vsel %vm336, %v334, %v331
        %v338 = vadd.f32 %v328, 1.0
        %v339 = vlog2.pop %v338
        %v340 = vmul.f32 %v339, 0.6931472
        %v341 = vmul.f32 -0.5, %v328
        %v342 = vadd.f32 %v341, 1.0
        %v343 = vmul.f32 %v342, %v328
        %v344 = vand.u32 2147483647, %v328
        %vm345 = vcmp.lt.f32.partialorder %v344, 0.0004427343
        %v346 = vsel %vm345, %v343, %v340
        %v347 = vadd.f32 %v319, %v337
        %v348 = vadd.f32 %v320, %v346
        %v349 = vsub.f32 0.0, %v347
        %v350 = vsub.f32 0.0, %v348
        %v351 = vadd.f32 %v349, 0.0
        %v352 = vadd.f32 %v350, 0.0
        %353 = vset.pattern.permute.xlu0 1
        %354 = vperm.xlu0 %353, %v296
        %v355 = vpop.permute.xlu0 %354
        %356 = vset.pattern.permute.xlu0 1
        %357 = vperm.xlu0 %356, %v297
        %v358 = vpop.permute.xlu0 %357
        %vm359 = vcmp.eq.s32.totalorder %v295, %v355
        %vm360 = vcmp.eq.s32.totalorder %v295, %v358
        %v361 = vsel %vm359, %v288, 0.0
        %v362 = vsel %vm360, %v291, 0.0
        %v363 = vsel %vm308, %v361, 0.0
        %364 = vadd.xlane.f32.xlu0 %v363
        %v365 = vpop.xlane.xlu0 %364
        %v366 = vsel %vm308, %v362, 0.0
        %367 = vadd.xlane.f32.xlu0 %v366
        %v368 = vpop.xlane.xlu0 %367
        %v369 = vsub.f32 %v237, %v365
        %v370 = vsub.f32 %v239, %v368
        %v371 = vsub.f32 0.0, %v369
        %v372 = vsub.f32 0.0, %v370
        %v373 = vmax.f32 %v371, 0.0
        %v374 = vmax.f32 %v372, 0.0
        %v375 = vand.u32 2147483647, %v369
        %v376 = vand.u32 2147483647, %v370
        %v377 = vsub.f32 0.0, %v375
        %v378 = vsub.f32 0.0, %v376
        %v379 = vmul.f32 %v377, 1.442695
        %v380 = vpow.pop %v379
        %v381 = vmul.f32 %v378, 1.442695
        %v382 = vpow.pop %v381
        %v383 = vadd.f32 %v380, 1.0
        %v384 = vlog2.pop %v383
        %v385 = vmul.f32 %v384, 0.6931472
        %v386 = vmul.f32 -0.5, %v380
        %v387 = vadd.f32 %v386, 1.0
        %v388 = vmul.f32 %v387, %v380
        %v389 = vand.u32 2147483647, %v380
        %vm390 = vcmp.lt.f32.partialorder %v389, 0.0004427343
        %v391 = vsel %vm390, %v388, %v385
        %v392 = vadd.f32 %v382, 1.0
        %v393 = vlog2.pop %v392
        %v394 = vmul.f32 %v393, 0.6931472
        %v395 = vmul.f32 -0.5, %v382
        %v396 = vadd.f32 %v395, 1.0
        %v397 = vmul.f32 %v396, %v382
        %v398 = vand.u32 2147483647, %v382
        %vm399 = vcmp.lt.f32.partialorder %v398, 0.0004427343
        %v400 = vsel %vm399, %v397, %v394
        %v401 = vadd.f32 %v373, %v391
        %v402 = vadd.f32 %v374, %v400
        %v403 = vsub.f32 0.0, %v401
        %v404 = vsub.f32 0.0, %v402
        %v405 = vadd.f32 %v351, %v403
        %v406 = vadd.f32 %v352, %v404
        %407 = vset.pattern.permute.xlu0 2
        %408 = vperm.xlu0 %407, %v296
        %v409 = vpop.permute.xlu0 %408
        %410 = vset.pattern.permute.xlu0 2
        %411 = vperm.xlu0 %410, %v297
        %v412 = vpop.permute.xlu0 %411
        %vm413 = vcmp.eq.s32.totalorder %v295, %v409
        %vm414 = vcmp.eq.s32.totalorder %v295, %v412
        %v415 = vsel %vm413, %v288, 0.0
        %v416 = vsel %vm414, %v291, 0.0
        %v417 = vsel %vm308, %v415, 0.0
        %418 = vadd.xlane.f32.xlu0 %v417
        %v419 = vpop.xlane.xlu0 %418
        %v420 = vsel %vm308, %v416, 0.0
        %421 = vadd.xlane.f32.xlu0 %v420
        %v422 = vpop.xlane.xlu0 %421
        %v423 = vsub.f32 %v237, %v419
        %v424 = vsub.f32 %v239, %v422
        %v425 = vsub.f32 0.0, %v423
        %v426 = vsub.f32 0.0, %v424
        %v427 = vmax.f32 %v425, 0.0
        %v428 = vmax.f32 %v426, 0.0
        %v429 = vand.u32 2147483647, %v423
        %v430 = vand.u32 2147483647, %v424
        %v431 = vsub.f32 0.0, %v429
        %v432 = vsub.f32 0.0, %v430
        %v433 = vmul.f32 %v431, 1.442695
        %v434 = vpow.pop %v433
        %v435 = vmul.f32 %v432, 1.442695
        %v436 = vpow.pop %v435
        %v437 = vadd.f32 %v434, 1.0
        %v438 = vlog2.pop %v437
        %v439 = vmul.f32 %v438, 0.6931472
        %v440 = vmul.f32 -0.5, %v434
        %v441 = vadd.f32 %v440, 1.0
        %v442 = vmul.f32 %v441, %v434
        %v443 = vand.u32 2147483647, %v434
        %vm444 = vcmp.lt.f32.partialorder %v443, 0.0004427343
        %v445 = vsel %vm444, %v442, %v439
        %v446 = vadd.f32 %v436, 1.0
        %v447 = vlog2.pop %v446
        %v448 = vmul.f32 %v447, 0.6931472
        %v449 = vmul.f32 -0.5, %v436
        %v450 = vadd.f32 %v449, 1.0
        %v451 = vmul.f32 %v450, %v436
        %v452 = vand.u32 2147483647, %v436
        %vm453 = vcmp.lt.f32.partialorder %v452, 0.0004427343
        %v454 = vsel %vm453, %v451, %v448
        %v455 = vadd.f32 %v427, %v445
        %v456 = vadd.f32 %v428, %v454
        %v457 = vsub.f32 0.0, %v455
        %v458 = vsub.f32 0.0, %v456
        %v459 = vadd.f32 %v405, %v457
        %v460 = vadd.f32 %v406, %v458
        %v461 = vlaneseq
        %v462 = vshrl.u32 %v461, 7
        %v463 = vadd.s32 %v462, 8
        %v464 = vstv %s225
        %v465 = vadd.s32 %v464, %v462
        %v466 = vadd.s32 %v464, %v463
        %vm467 = vcmp.lt.s32.totalorder %v465, 20
        %vm468 = vcmp.lt.s32.totalorder %v466, 20
        %v469 = vsel %vm467, %v459, 0.0
        %v470 = vsel %vm468, %v460, 0.0
        %vm471 = vcmask 7168
        %v472 = vsel %vm471, %v469, 0.0
        %v473 = vsel %vm471, %v470, 0.0
        %v474 = vadd.f32 %v472, %v473
        %475 = vadd.xlane.f32.xlu0 %v474
        %v476 = vpop.xlane.xlu0 %475
        %v477 = vrot.slane %v476, 4
        %v478 = vadd.f32 %v476, %v477
        %v479 = vrot.slane %v478, 2
        %v480 = vadd.f32 %v478, %v479
        %v481 = vrot.slane %v480, 1
        %v482 = vadd.f32 %v480, %v481
        %s483 = vtos %v482
        %v484 = vstv %s483
        %vm485 = vcmask 0
        %486 = vst.msk [vmem:[%s205] sm:$0x1] %vm485, %v484
        %p487 = scmp.lt.s32.totalorder %s15, 1
        %s488 = scalar_select %p487, %s15, 1
        %s489 = scalar_lea.vmem %s3, %s488
        // Predicated region
        $region37: #{tpu_custom_call.1} parent=31 // pred_check
          %p490 = pneg %p106
        $region38: #{tpu_custom_call.1} parent=31 // pred_check_branch
          %492 = sbr.rel (%p490) target = $region40
        $region39: #{tpu_custom_call.1} parent=31 // pred_region
          _
        $region40: #{tpu_custom_call.1} parent=31 // pred_fallthru
          _
      $region32: #{tpu_custom_call.1} parent=5 // pred_fallthru
        _
      %p493 = scmp.le.s32.totalorder 2, %s10
      // Predicated region
      $region41: #{tpu_custom_call.1} parent=5 // pred_check
        %p494 = pneg %p493
      $region42: #{tpu_custom_call.1} parent=5 // pred_check_branch
        %496 = sbr.rel (%p494) target = $region44
      $region43: #{tpu_custom_call.1} parent=5 // pred_region
        %s497 = ssub.s32 %s10, 2
        // Predicated region
        $region45: #{tpu_custom_call.1} parent=43 // pred_check
          %p498 = pneg %p112
        $region46: #{tpu_custom_call.1} parent=43 // pred_check_branch
          %500 = sbr.rel (%p498) target = $region48
        $region47: #{tpu_custom_call.1} parent=43 // pred_region
          %p501 = scmp.lt.s32.totalorder %s16, 1
          %s502 = scalar_select %p501, %s16, 1
          %s503 = scalar_lea.vmem %s3, %s502
        $region48: #{tpu_custom_call.1} parent=43 // pred_fallthru
          _
      $region44: #{tpu_custom_call.1} parent=5 // pred_fallthru
        _
    $region6: #{tpu_custom_call.1} parent=1 // loop_footer
      %s14 = sadd.s32 1, %s10
    $region7: #{tpu_custom_call.1} parent=1 // loop_footer_branch
      %9 = sbr.rel target = $region3
    $region8: #{tpu_custom_call.1} parent=1 // loop_exit
      _
    %504 = vsyncpa [#allocation3], 1
    %s505 = scalar_lea.sflag [#allocation3], 1
    %506 = vsyncpa %s505, 1

// kernel: tpu_custom_call.1
$region0: #{tpu_custom_call.1}
  #allocation0 [shape = 'u32[]', space=smem, size = 0x4, offset = 0x4, fixed_abs, tag = 'smem constant byte address 0x4 - core index']
  #allocation1 [shape = 'u32[144,128]{1,0:T(1,128)}', space=vmem, size = 0x12000, scoped, tag = 'internal scratch']
  %s0 = inlined_call_operand.vmem [shape: f32[32,128], index: 0, kind: input, shape index: {}]
  %s1 = inlined_call_operand.hbm [shape: bf16[32,128], index: 1, kind: input, shape index: {}]
  %s2 = inlined_call_operand.vmem [shape: s32[32,3], index: 2, kind: input, shape index: {}]
  %s3 = inlined_call_operand.vmem [shape: f32[2,1,1], index: 3, kind: output, shape index: {}]
  %s4 = sld [smem:[#allocation0]]
  $region49: #{tpu_custom_call.1} parent=0
    _
  %s6 = ssub.s32 1, %s4
  %s7 = scalar_select 0, %s6, %s4
  $region1: #{tpu_custom_call.1} parent=0
    #allocation2 [shape = 'u8[8192]{0}', space=vmem, size = 0x2000, scoped, tag = 'input window, operand 1, single buffered']
    #allocation3 [shape = 's32[2]{0}', space=sflag, size = 0x8, scoped, tag = 'scoped memory for tpu_custom_call.1']
    %8 = vsyncpa [#allocation3], 0
    loop: start=0, step=1, limit=4
    $region2: #{tpu_custom_call.1} parent=1 // loop_pre_header
      _
    $region3: #{tpu_custom_call.1} parent=1 // loop_header
      %s10 = sphi 0, %s14
      %p11 = scmp.ge.s32.totalorder %s10, 4
      %s20 = sphi 0, %s22
      %s23 = sphi 0, %s20
      %s24 = sphi 0, %s23
      %s40 = sphi 0, %s24
      %s44 = sphi 0, %s44
      %s46 = sphi 0, %s44
      %s47 = sphi 0, %s46
      %s61 = sphi 0, %s47
      %s67 = sphi 0, %s69
      %s70 = sphi 0, %s67
      %s71 = sphi 0, %s70
      %s87 = sphi 0, %s71
      %s93 = sphi 0, %s95
      %s96 = sphi 0, %s93
      %s97 = sphi 0, %s96
      %s113 = sphi 0, %s97
    $region4: #{tpu_custom_call.1} parent=1 // loop_header_branch
      %13 = sbr.rel (%p11) target = $region8
    $region5: #{tpu_custom_call.1} parent=1 // loop_body
      %s15 = ssub.s32 %s10, 1
      %s16 = ssub.s32 %s10, 2
      %s17 = sadd.s32 %s10, 1
      %s18 = ssub.s32 %s10, %s17
      %p19 = scmp.eq.s32.totalorder %s18, 0
      %s21 = sadd.s32 %s20, 1
      %s22 = scalar_select %p19, %s20, %s21
      %p25 = pneg %p19
      %p26 = scmp.eq.s32.totalorder %s10, 1
      %p27 = por %p25, %p26
      %p28 = scmp.ne.s32.totalorder %s20, %s23
      %p29 = scmp.eq.s32.totalorder %s10, 0
      %p30 = por %p28, %p29
      %p31 = scmp.ne.s32.totalorder %s20, %s23
      %p32 = scmp.eq.s32.totalorder %s15, 1
      %p33 = por %p31, %p32
      %p34 = scmp.ne.s32.totalorder %s23, %s24
      %p35 = scmp.eq.s32.totalorder %s15, 0
      %p36 = por %p34, %p35
      %p37 = scmp.ne.s32.totalorder %s23, %s24
      %p38 = scmp.eq.s32.totalorder %s16, 1
      %p39 = por %p37, %p38
      %p41 = scmp.ne.s32.totalorder %s24, %s40
      %p42 = scmp.eq.s32.totalorder %s16, 0
      %p43 = por %p41, %p42
      %s45 = sadd.s32 %s44, 1
      %p48 = scmp.eq.s32.totalorder %s10, 1
      %p49 = scmp.ne.s32.totalorder %s44, %s46
      %p50 = scmp.eq.s32.totalorder %s10, 0
      %p51 = por %p49, %p50
      %p52 = scmp.ne.s32.totalorder %s44, %s46
      %p53 = scmp.eq.s32.totalorder %s15, 1
      %p54 = por %p52, %p53
      %p55 = scmp.ne.s32.totalorder %s46, %s47
      %p56 = scmp.eq.s32.totalorder %s15, 0
      %p57 = por %p55, %p56
      %p58 = scmp.ne.s32.totalorder %s46, %s47
      %p59 = scmp.eq.s32.totalorder %s16, 1
      %p60 = por %p58, %p59
      %p62 = scmp.ne.s32.totalorder %s47, %s61
      %p63 = scmp.eq.s32.totalorder %s16, 0
      %p64 = por %p62, %p63
      %s65 = ssub.s32 %s10, %s17
      %p66 = scmp.eq.s32.totalorder %s65, 0
      %s68 = sadd.s32 %s67, 1
      %s69 = scalar_select %p66, %s67, %s68
      %p72 = pneg %p66
      %p73 = scmp.eq.s32.totalorder %s10, 1
      %p74 = por %p72, %p73
      %p75 = scmp.ne.s32.totalorder %s67, %s70
      %p76 = scmp.eq.s32.totalorder %s10, 0
      %p77 = por %p75, %p76
      %p78 = scmp.ne.s32.totalorder %s67, %s70
      %p79 = scmp.eq.s32.totalorder %s15, 1
      %p80 = por %p78, %p79
      %p81 = scmp.ne.s32.totalorder %s70, %s71
      %p82 = scmp.eq.s32.totalorder %s15, 0
      %p83 = por %p81, %p82
      %p84 = scmp.ne.s32.totalorder %s70, %s71
      %p85 = scmp.eq.s32.totalorder %s16, 1
      %p86 = por %p84, %p85
      %p88 = scmp.ne.s32.totalorder %s71, %s87
      %p89 = scmp.eq.s32.totalorder %s16, 0
      %p90 = por %p88, %p89
      %s91 = ssub.s32 %s10, %s17
      %p92 = scmp.eq.s32.totalorder %s91, 0
      %s94 = sadd.s32 %s93, 1
      %s95 = scalar_select %p92, %s93, %s94
      %p98 = pneg %p92
      %p99 = scmp.eq.s32.totalorder %s10, 1
      %p100 = por %p98, %p99
      %p101 = scmp.ne.s32.totalorder %s93, %s96
      %p102 = scmp.eq.s32.totalorder %s10, 0
      %p103 = por %p101, %p102
      %p104 = scmp.ne.s32.totalorder %s93, %s96
      %p105 = scmp.eq.s32.totalorder %s15, 1
      %p106 = por %p104, %p105
      %p107 = scmp.ne.s32.totalorder %s96, %s97
      %p108 = scmp.eq.s32.totalorder %s15, 0
      %p109 = por %p107, %p108
      %p110 = scmp.ne.s32.totalorder %s96, %s97
      %p111 = scmp.eq.s32.totalorder %s16, 1
      %p112 = por %p110, %p111
      %p114 = scmp.ne.s32.totalorder %s97, %s113
      %p115 = scmp.eq.s32.totalorder %s16, 0
      %p116 = por %p114, %p115
      %p117 = scmp.le.s32.totalorder 1, %s10
      %p118 = scmp.lt.s32.totalorder %s10, 3
      %p119 = pnand %p117, %p118
      %p120 = pneg %p119
      // Predicated region
      $region9: #{tpu_custom_call.1} parent=5 // pred_check
        _
      $region10: #{tpu_custom_call.1} parent=5 // pred_check_branch
        %122 = sbr.rel (%p119) target = $region12
      $region11: #{tpu_custom_call.1} parent=5 // pred_region
        %s123 = ssub.s32 %s10, 1
        // Predicated region
        $region13: #{tpu_custom_call.1} parent=11 // pred_check
          %p124 = pneg %p57
        $region14: #{tpu_custom_call.1} parent=11 // pred_check_branch
          %126 = sbr.rel (%p124) target = $region16
        $region15: #{tpu_custom_call.1} parent=11 // pred_region
          %s128 = ssub.s32 256, 256
          %129 = vsyncadd [#allocation3], %s128
          %s130 = sshll.u32 [#allocation2], 4
          %s131 = int_to_ptr.vmem [resolvable:$true] %s130
          %136 = dma.hbm_to_vmem [thread:$0]  %s1, 256, %s131, [#allocation3], 64, 64, 4
        $region16: #{tpu_custom_call.1} parent=11 // pred_fallthru
          _
      $region12: #{tpu_custom_call.1} parent=5 // pred_fallthru
        _
      %p137 = scmp.lt.s32.totalorder %s10, 2
      // Predicated region
      $region17: #{tpu_custom_call.1} parent=5 // pred_check
        %p138 = pneg %p137
      $region18: #{tpu_custom_call.1} parent=5 // pred_check_branch
        %140 = sbr.rel (%p138) target = $region20
      $region19: #{tpu_custom_call.1} parent=5 // pred_region
        // Predicated region
        $region21: #{tpu_custom_call.1} parent=19 // pred_check
          %p141 = pneg %p30
        $region22: #{tpu_custom_call.1} parent=19 // pred_check_branch
          %143 = sbr.rel (%p141) target = $region24
        $region23: #{tpu_custom_call.1} parent=19 // pred_region
          %s144 = smul.u32 2, %s10
          %p145 = scmp.lt.s32.totalorder %s144, 3
          %s146 = scalar_select %p145, %s144, 3
          %s147 = smul.addr %s146, 8
          %s148 = scalar_lea.vmem %s0, %s147
          %s149 = smul.u32 2, %s10
        $region24: #{tpu_custom_call.1} parent=19 // pred_fallthru
          _
        // Predicated region
        $region25: #{tpu_custom_call.1} parent=19 // pred_check
          %p150 = pneg %p77
        $region26: #{tpu_custom_call.1} parent=19 // pred_check_branch
          %152 = sbr.rel (%p150) target = $region28
        $region27: #{tpu_custom_call.1} parent=19 // pred_region
          %s153 = smul.u32 2, %s10
          %p154 = scmp.lt.s32.totalorder %s153, 3
          %s155 = scalar_select %p154, %s153, 3
          %s156 = smul.addr %s155, 8
          %s157 = scalar_lea.vmem %s2, %s156
          %s158 = smul.u32 2, %s10
        $region28: #{tpu_custom_call.1} parent=19 // pred_fallthru
          _
      $region20: #{tpu_custom_call.1} parent=5 // pred_fallthru
        _
      %p159 = scmp.le.s32.totalorder 1, %s10
      %p160 = scmp.lt.s32.totalorder %s10, 3
      %p161 = pnand %p159, %p160
      %p162 = pneg %p161
      // Predicated region
      $region29: #{tpu_custom_call.1} parent=5 // pred_check
        _
      $region30: #{tpu_custom_call.1} parent=5 // pred_check_branch
        %164 = sbr.rel (%p161) target = $region32
      $region31: #{tpu_custom_call.1} parent=5 // pred_region
        %s165 = ssub.s32 %s10, 1
        // Predicated region
        $region33: #{tpu_custom_call.1} parent=31 // pred_check
          %p166 = pneg %p57
        $region34: #{tpu_custom_call.1} parent=31 // pred_check_branch
          %168 = sbr.rel (%p166) target = $region36
        $region35: #{tpu_custom_call.1} parent=31 // pred_region
          %169 = dma.done [#allocation3], 256
        $region36: #{tpu_custom_call.1} parent=31 // pred_fallthru
          _
        %s170 = smul.u32 2, %s15
        %p171 = scmp.lt.s32.totalorder %s170, 3
        %s172 = scalar_select %p171, %s170, 3
        %s173 = smul.addr %s172, 8
        %s174 = scalar_lea.vmem %s0, %s173
        %p175 = pneg %p36
        %p176 = pneg %p33
        %p177 = pneg %p57
        %p178 = pneg %p54
        %s179 = smul.u32 2, %s15
        %p180 = scmp.lt.s32.totalorder %s179, 3
        %s181 = scalar_select %p180, %s179, 3
        %s182 = smul.addr %s181, 8
        %s183 = scalar_lea.vmem %s2, %s182
        %p184 = pneg %p83
        %p185 = pneg %p80
        %p186 = pneg %p109
        %p187 = pneg %p106
        %p188 = scmp.lt.s32.totalorder %s15, 1
        %s189 = scalar_select %p188, %s15, 1
        %s190 = scalar_lea.vmem %s3, %s189
        %s191 = smul.u32 2, %s15
        %p192 = scmp.lt.s32.totalorder %s191, 3
        %s193 = scalar_select %p192, %s191, 3
        %s194 = smul.addr %s193, 8
        %s195 = scalar_lea.vmem %s0, %s194
        %s196 = smul.u32 2, %s15
        %s197 = smul.u32 2, %s15
        %p198 = scmp.lt.s32.totalorder %s197, 3
        %s199 = scalar_select %p198, %s197, 3
        %s200 = smul.addr %s199, 8
        %s201 = scalar_lea.vmem %s2, %s200
        %s202 = smul.u32 2, %s15
        %p203 = scmp.lt.s32.totalorder %s15, 1
        %s204 = scalar_select %p203, %s15, 1
        %s205 = scalar_lea.vmem %s3, %s204
        %v207 = vld [vmem:[%s195] sm:$0xff]
        %v208 = vld [vmem:[%s195 + $0x8] sm:$0xff]
        %v209 = vmul.f32 %v207, %v207
        %v210 = vmul.f32 %v208, %v208
        %211 = vadd.xlane.f32.xlu0 %v209
        %v212 = vpop.xlane.xlu0 %211
        %213 = vadd.xlane.f32.xlu0 %v210
        %v214 = vpop.xlane.xlu0 %213
        %v215 = vmax.f32 %v212, 1e-16
        %v216 = vmax.f32 %v214, 1e-16
        %v217 = vrsqrt.pop %v215
        %v218 = vrsqrt.pop %v216
        %v219 = vmul.f32 %v207, %v217
        %v220 = vmul.f32 %v208, %v218
        %v221 = vld [vmem:[#allocation2] sm:$0xf]
        %v222 = vld [vmem:[#allocation2 + $0x4] sm:$0xf]
        %v223 = vld [vmem:[#allocation2 + $0x8] sm:$0xf]
        %v224 = vld [vmem:[#allocation2 + $0xc] sm:$0xf]
        %s225 = smul.u32 %s15, 16
        %s226 = sshra.s32 %s225, 3
        %s227 = sand.u32 %s225, 7
        %s228 = smul.addr %s226, 4
        %s229 = scalar_lea.vmem [#allocation2], %s228
        %v230 = vld [vmem:[%s229] sm:$0xf]
        %v231 = vld [vmem:[%s229 + $0x4] sm:$0xf]
        %v232 = vunpack.c.l.bf16 %v230
        %v233 = vunpack.c.l.bf16 %v231
        %v234 = vmul.f32 %v219, %v232
        %v235 = vmul.f32 %v220, %v233
        %236 = vadd.xlane.f32.xlu0 %v234
        %v237 = vpop.xlane.xlu0 %236
        %238 = vadd.xlane.f32.xlu0 %v235
        %v239 = vpop.xlane.xlu0 %238
        %v240 = vpack.c.bf16 %v220, %v219
        %v245 = vunpack.c.l.b16 %v221
        %v246 = vunpack.c.l.b16 %v222
        %v247 = vunpack.c.l.b16 %v223
        %v248 = vunpack.c.l.b16 %v224
        %v249 = vpack.c.b16 %v246, %v245
        %v250 = vpack.c.b16 %v248, %v247
        %253 = vmatprep.subr.bf16.mxu0 0
        %254 = vmatpush1.bf16.xpose.msra.mxu0 0
        %255 = vmatprep.subr.bf16.mxu0 0
        %256 = vmatpush1.bf16.xpose.msra.mxu0 0
        %257 = vmatprep.subr.bf16.mxu0 0
        %258 = vmatpush1.bf16.xpose.msra.mxu0 0
        %259 = vmatprep.subr.bf16.mxu0 0
        %260 = vmatpush1.bf16.xpose.msra.mxu0 0
        %261 = vmatprep.subr.bf16.mxu0 0
        %262 = vmatpush1.bf16.xpose.msra.mxu0 0
        %263 = vmatprep.subr.bf16.mxu0 0
        %264 = vmatpush1.bf16.xpose.msra.mxu0 0
        %265 = vmatprep.subr.bf16.mxu0 0
        %266 = vmatpush1.bf16.xpose.msra.mxu0 %v250
        %267 = vmatprep.subr.bf16.mxu0 0
        %268 = vmatpush1.bf16.xpose.msra.mxu0 %v249
        %269 = vmatprep.subr.bf16.mxu0 0
        %270 = vmatpush2.bf16.xpose.msra.mxu0 0
        %271 = vmatprep.subr.bf16.mxu0 0
        %272 = vmatpush2.bf16.xpose.msra.mxu0 0
        %273 = vmatprep.subr.bf16.mxu0 0
        %274 = vmatpush2.bf16.xpose.msra.mxu0 0
        %275 = vmatprep.subr.bf16.mxu0 0
        %276 = vmatpush2.bf16.xpose.msra.mxu0 0
        %277 = vmatprep.subr.bf16.mxu0 0
        %278 = vmatpush2.bf16.xpose.msra.mxu0 0
        %279 = vmatprep.subr.bf16.mxu0 0
        %280 = vmatpush2.bf16.xpose.msra.mxu0 0
        %281 = vmatprep.subr.bf16.mxu0 0
        %282 = vmatpush2.bf16.xpose.msra.mxu0 0
        %283 = vmatprep.subr.bf16.mxu0 0
        %284 = vmatpush2.bf16.xpose.msra.mxu0 0
        %285 = vmatprep.mubr.bf16.mxu0 0
        %286 = vmatmul.mubr.bf16.gmra.mxu0 %v240
        %v287 = vpop.f32.mrf.mxu0
        %v288 = vadd.f32 0.0, %v287
        %v289 = vpop.f32.mrf.mxu0
        %v290 = vpop.f32.mrf.mxu0
        %v291 = vadd.f32 0.0, %v290
        %v292 = vpop.f32.mrf.mxu0
        %293 = vdwg.mxu0
        %v294 = vlaneseq
        %v295 = vand.u32 %v294, 127
        %v296 = vld [vmem:[%s201] sm:$0xff]
        %v297 = vld [vmem:[%s201 + $0x8] sm:$0xff]
        %298 = vset.pattern.permute.xlu0 0
        %299 = vperm.xlu0 %298, %v296
        %v300 = vpop.permute.xlu0 %299
        %301 = vset.pattern.permute.xlu0 0
        %302 = vperm.xlu0 %301, %v297
        %v303 = vpop.permute.xlu0 %302
        %vm304 = vcmp.eq.s32.totalorder %v295, %v300
        %vm305 = vcmp.eq.s32.totalorder %v295, %v303
        %v306 = vsel %vm304, %v288, 0.0
        %v307 = vsel %vm305, %v291, 0.0
        %vm308 = vcmask 261120
        %v309 = vsel %vm308, %v306, 0.0
        %310 = vadd.xlane.f32.xlu0 %v309
        %v311 = vpop.xlane.xlu0 %310
        %v312 = vsel %vm308, %v307, 0.0
        %313 = vadd.xlane.f32.xlu0 %v312
        %v314 = vpop.xlane.xlu0 %313
        %v315 = vsub.f32 %v237, %v311
        %v316 = vsub.f32 %v239, %v314
        %v317 = vsub.f32 0.0, %v315
        %v318 = vsub.f32 0.0, %v316
        %v319 = vmax.f32 %v317, 0.0
        %v320 = vmax.f32 %v318, 0.0
        %v321 = vand.u32 2147483647, %v315
        %v322 = vand.u32 2147483647, %v316
        %v323 = vsub.f32 0.0, %v321
        %v324 = vsub.f32 0.0, %v322
        %v325 = vmul.f32 %v323, 1.442695
        %v326 = vpow.pop %v325
        %v327 = vmul.f32 %v324, 1.442695
        %v328 = vpow.pop %v327
        %v329 = vadd.f32 %v326, 1.0
        %v330 = vlog2.pop %v329
        %v331 = vmul.f32 %v330, 0.6931472
        %v332 = vmul.f32 -0.5, %v326
        %v333 = vadd.f32 %v332, 1.0
        %v334 = vmul.f32 %v333, %v326
        %v335 = vand.u32 2147483647, %v326
        %vm336 = vcmp.lt.f32.partialorder %v335, 0.0004427343
        %v337 = vsel %vm336, %v334, %v331
        %v338 = vadd.f32 %v328, 1.0
        %v339 = vlog2.pop %v338
        %v340 = vmul.f32 %v339, 0.6931472
        %v341 = vmul.f32 -0.5, %v328
        %v342 = vadd.f32 %v341, 1.0
        %v343 = vmul.f32 %v342, %v328
        %v344 = vand.u32 2147483647, %v328
        %vm345 = vcmp.lt.f32.partialorder %v344, 0.0004427343
        %v346 = vsel %vm345, %v343, %v340
        %v347 = vadd.f32 %v319, %v337
        %v348 = vadd.f32 %v320, %v346
        %v349 = vsub.f32 0.0, %v347
        %v350 = vsub.f32 0.0, %v348
        %v351 = vadd.f32 %v349, 0.0
        %v352 = vadd.f32 %v350, 0.0
        %353 = vset.pattern.permute.xlu0 1
        %354 = vperm.xlu0 %353, %v296
        %v355 = vpop.permute.xlu0 %354
        %356 = vset.pattern.permute.xlu0 1
        %357 = vperm.xlu0 %356, %v297
        %v358 = vpop.permute.xlu0 %357
        %vm359 = vcmp.eq.s32.totalorder %v295, %v355
        %vm360 = vcmp.eq.s32.totalorder %v295, %v358
        %v361 = vsel %vm359, %v288, 0.0
        %v362 = vsel %vm360, %v291, 0.0
        %v363 = vsel %vm308, %v361, 0.0
        %364 = vadd.xlane.f32.xlu0 %v363
        %v365 = vpop.xlane.xlu0 %364
        %v366 = vsel %vm308, %v362, 0.0
        %367 = vadd.xlane.f32.xlu0 %v366
        %v368 = vpop.xlane.xlu0 %367
        %v369 = vsub.f32 %v237, %v365
        %v370 = vsub.f32 %v239, %v368
        %v371 = vsub.f32 0.0, %v369
        %v372 = vsub.f32 0.0, %v370
        %v373 = vmax.f32 %v371, 0.0
        %v374 = vmax.f32 %v372, 0.0
        %v375 = vand.u32 2147483647, %v369
        %v376 = vand.u32 2147483647, %v370
        %v377 = vsub.f32 0.0, %v375
        %v378 = vsub.f32 0.0, %v376
        %v379 = vmul.f32 %v377, 1.442695
        %v380 = vpow.pop %v379
        %v381 = vmul.f32 %v378, 1.442695
        %v382 = vpow.pop %v381
        %v383 = vadd.f32 %v380, 1.0
        %v384 = vlog2.pop %v383
        %v385 = vmul.f32 %v384, 0.6931472
        %v386 = vmul.f32 -0.5, %v380
        %v387 = vadd.f32 %v386, 1.0
        %v388 = vmul.f32 %v387, %v380
        %v389 = vand.u32 2147483647, %v380
        %vm390 = vcmp.lt.f32.partialorder %v389, 0.0004427343
        %v391 = vsel %vm390, %v388, %v385
        %v392 = vadd.f32 %v382, 1.0
        %v393 = vlog2.pop %v392
        %v394 = vmul.f32 %v393, 0.6931472
        %v395 = vmul.f32 -0.5, %v382
        %v396 = vadd.f32 %v395, 1.0
        %v397 = vmul.f32 %v396, %v382
        %v398 = vand.u32 2147483647, %v382
        %vm399 = vcmp.lt.f32.partialorder %v398, 0.0004427343
        %v400 = vsel %vm399, %v397, %v394
        %v401 = vadd.f32 %v373, %v391
        %v402 = vadd.f32 %v374, %v400
        %v403 = vsub.f32 0.0, %v401
        %v404 = vsub.f32 0.0, %v402
        %v405 = vadd.f32 %v351, %v403
        %v406 = vadd.f32 %v352, %v404
        %407 = vset.pattern.permute.xlu0 2
        %408 = vperm.xlu0 %407, %v296
        %v409 = vpop.permute.xlu0 %408
        %410 = vset.pattern.permute.xlu0 2
        %411 = vperm.xlu0 %410, %v297
        %v412 = vpop.permute.xlu0 %411
        %vm413 = vcmp.eq.s32.totalorder %v295, %v409
        %vm414 = vcmp.eq.s32.totalorder %v295, %v412
        %v415 = vsel %vm413, %v288, 0.0
        %v416 = vsel %vm414, %v291, 0.0
        %v417 = vsel %vm308, %v415, 0.0
        %418 = vadd.xlane.f32.xlu0 %v417
        %v419 = vpop.xlane.xlu0 %418
        %v420 = vsel %vm308, %v416, 0.0
        %421 = vadd.xlane.f32.xlu0 %v420
        %v422 = vpop.xlane.xlu0 %421
        %v423 = vsub.f32 %v237, %v419
        %v424 = vsub.f32 %v239, %v422
        %v425 = vsub.f32 0.0, %v423
        %v426 = vsub.f32 0.0, %v424
        %v427 = vmax.f32 %v425, 0.0
        %v428 = vmax.f32 %v426, 0.0
        %v429 = vand.u32 2147483647, %v423
        %v430 = vand.u32 2147483647, %v424
        %v431 = vsub.f32 0.0, %v429
        %v432 = vsub.f32 0.0, %v430
        %v433 = vmul.f32 %v431, 1.442695
        %v434 = vpow.pop %v433
        %v435 = vmul.f32 %v432, 1.442695
        %v436 = vpow.pop %v435
        %v437 = vadd.f32 %v434, 1.0
        %v438 = vlog2.pop %v437
        %v439 = vmul.f32 %v438, 0.6931472
        %v440 = vmul.f32 -0.5, %v434
        %v441 = vadd.f32 %v440, 1.0
        %v442 = vmul.f32 %v441, %v434
        %v443 = vand.u32 2147483647, %v434
        %vm444 = vcmp.lt.f32.partialorder %v443, 0.0004427343
        %v445 = vsel %vm444, %v442, %v439
        %v446 = vadd.f32 %v436, 1.0
        %v447 = vlog2.pop %v446
        %v448 = vmul.f32 %v447, 0.6931472
        %v449 = vmul.f32 -0.5, %v436
        %v450 = vadd.f32 %v449, 1.0
        %v451 = vmul.f32 %v450, %v436
        %v452 = vand.u32 2147483647, %v436
        %vm453 = vcmp.lt.f32.partialorder %v452, 0.0004427343
        %v454 = vsel %vm453, %v451, %v448
        %v455 = vadd.f32 %v427, %v445
        %v456 = vadd.f32 %v428, %v454
        %v457 = vsub.f32 0.0, %v455
        %v458 = vsub.f32 0.0, %v456
        %v459 = vadd.f32 %v405, %v457
        %v460 = vadd.f32 %v406, %v458
        %v461 = vlaneseq
        %v462 = vshrl.u32 %v461, 7
        %v463 = vadd.s32 %v462, 8
        %v464 = vstv %s225
        %v465 = vadd.s32 %v464, %v462
        %v466 = vadd.s32 %v464, %v463
        %vm467 = vcmp.lt.s32.totalorder %v465, 20
        %vm468 = vcmp.lt.s32.totalorder %v466, 20
        %v469 = vsel %vm467, %v459, 0.0
        %v470 = vsel %vm468, %v460, 0.0
        %vm471 = vcmask 7168
        %v472 = vsel %vm471, %v469, 0.0
        %v473 = vsel %vm471, %v470, 0.0
        %v474 = vadd.f32 %v472, %v473
        %475 = vadd.xlane.f32.xlu0 %v474
        %v476 = vpop.xlane.xlu0 %475
        %v477 = vrot.slane %v476, 4
        %v478 = vadd.f32 %v476, %v477
        %v479 = vrot.slane %v478, 2
        %v480 = vadd.f32 %v478, %v479
        %v481 = vrot.slane %v480, 1
        %v482 = vadd.f32 %v480, %v481
        %s483 = vtos %v482
        %v484 = vstv %s483
        %vm485 = vcmask 0
        %486 = vst.msk [vmem:[%s205] sm:$0x1] %vm485, %v484
        %p487 = scmp.lt.s32.totalorder %s15, 1
        %s488 = scalar_select %p487, %s15, 1
        %s489 = scalar_lea.vmem %s3, %s488
        // Predicated region
        $region37: #{tpu_custom_call.1} parent=31 // pred_check
          %p490 = pneg %p106
        $region38: #{tpu_custom_call.1} parent=31 // pred_check_branch
          %492 = sbr.rel (%p490) target = $region40
        $region39: #{tpu_custom_call.1} parent=31 // pred_region
          _
        $region40: #{tpu_custom_call.1} parent=31 // pred_fallthru
          _
      $region32: #{tpu_custom_call.1} parent=5 // pred_fallthru
        _
      %p493 = scmp.le.s32.totalorder 2, %s10
      // Predicated region
      $region41: #{tpu_custom_call.1} parent=5 // pred_check
        %p494 = pneg %p493
      $region42: #{tpu_custom_call.1} parent=5 // pred_check_branch
        %496 = sbr.rel (%p494) target = $region44
      $region43: #{tpu_custom_call.1} parent=5 // pred_region
        %s497 = ssub.s32 %s10, 2
        // Predicated region
        $region45: #{tpu_custom_call.1} parent=43 // pred_check
          %p498 = pneg %p112
        $region46: #{tpu_custom_call.1} parent=43 // pred_check_branch
          %500 = sbr.rel (%p498) target = $region48
        $region47: #{tpu_custom_call.1} parent=43 // pred_region
          %p501 = scmp.lt.s32.totalorder %s16, 1
          %s502 = scalar_select %p501, %s16, 1
          %s503 = scalar_lea.vmem %s3, %s502
        $region48: #{tpu_custom_call.1} parent=43 // pred_fallthru
          _
      $region44: #{tpu_custom_call.1} parent=5 // pred_fallthru
        _
    $region6: #{tpu_custom_call.1} parent=1 // loop_footer
      %s14 = sadd.s32 1, %s10
    $region7: #{tpu_custom_call.1} parent=1 // loop_footer_branch
      %9 = sbr.rel target = $region3
    $region8: #{tpu_custom_call.1} parent=1 // loop_exit
      _
    %504 = vsyncpa [#allocation3], 1
    %s505 = scalar_lea.sflag [#allocation3], 1
    %506 = vsyncpa %s505, 1

</llo_original>
